<compile_context>
chip_gen: v7x
topology: tpu7x:2x2x1
jax: 0.10.0
libtpu: 0.0.40
codegen_flags: <defaults>
</compile_context>

<pallas_src>
import functools

import numpy as np
import jax
import jax.numpy as jnp
from jax import lax
from jax.experimental import pallas as pl
from jax.experimental.pallas import tpu as pltpu

NEG_SLOPE = 0.1
BN_EPS = 1e-5
_SUBLANE = 8


def _basic_block_kernel(x_ref, w1_ref, w2_ref, p_ref, m_ref, o_ref, *, width):
    # x_ref:  (nb, Cp, HW)  f32   channels-on-sublanes, flat H*W on lanes
    # w1_ref: (Cp, 9*Cp)    bf16  im2col weights, tap-major (kh, kw, cin)
    # w2_ref: (Cp, 9*Cp)    bf16
    # p_ref:  (4, Cp, 1)    f32   [scale1, bias1, scale2, bias2] (folded BN)
    # m_ref:  (9, 1, HW)    f32   per-tap border-validity masks (SAME padding)
    # o_ref:  (nb, Cp, HW)  f32
    nb, cp, hw = x_ref.shape

    # Hoisted once (re-used across the batch loop and both convs).
    s1 = p_ref[0]          # (Cp, 1) -- broadcasts along the dense lane axis
    b1 = p_ref[1]
    s2 = p_ref[2]
    b2 = p_ref[3]

    def conv3x3(h, w_ref_):
        # h: (Cp, HW) f32.  Build the 9-tap im2col slab with static lane
        # shifts (each tap is a whole-image shift on the flattened H*W lane
        # axis; wrapped / out-of-image lanes zeroed by precomputed masks),
        # then one bf16 MXU matmul with K = 9*Cp.
        taps = []
        t = 0
        for dh in (-1, 0, 1):
            for dw in (-1, 0, 1):
                off = dh * width + dw
                if off == 0:
                    taps.append(h)                      # center tap: no mask
                else:
                    # result[:, p] == h[:, p + off]  (static shift, lowers to
                    # lane rotation / slice+concat; works compiled + interpret)
                    r = jnp.roll(h, shift=-off, axis=h.ndim - 1)
                    taps.append(r * m_ref[t])
                t += 1
        # Sublane concat of 8-row-aligned blocks -> (9*Cp, HW).
        slab = jnp.concatenate(taps, axis=0).astype(jnp.bfloat16)
        return jnp.dot(w_ref_[...], slab,
                       preferred_element_type=jnp.float32)       # (Cp, HW) f32

    for b in range(nb):                          # small static batch block
        x = x_ref[b]                             # (Cp, HW) f32
        h = x * s1 + b1                          # BN1 (folded, eval mode)
        h = jnp.maximum(h, NEG_SLOPE * h)        # LeakyReLU(0.1)
        h = conv3x3(h, w1_ref)                   # conv1 (3x3, stride 1, pad 1)
        h = h * s2 + b2                          # BN2 (folded)
        h = jnp.maximum(h, NEG_SLOPE * h)        # LeakyReLU(0.1)
        h = conv3x3(h, w2_ref)                   # conv2
        o_ref[b] = (h + x_ref[b]).astype(o_ref.dtype)   # residual, x read late


def _round_up(v, m):
    return (v + m - 1) // m * m


def basic_block_pallas(x_nchw, w1_oihw, w2_oihw, scale1, bias1, scale2, bias2,
                       *, batch_block=1):
    """x_nchw: (N, C, H, W) float32.  Returns (N, C, H, W) float32."""
    N, C, H, W = x_nchw.shape
    Cout = w1_oihw.shape[0]
    assert Cout == C, "downsample=None requires inplanes == planes"
    assert N % batch_block == 0
    HW = H * W
    Cp = _round_up(C, _SUBLANE)          # pad channels to a sublane multiple

    # Lane-dense layout: (N, Cp, H*W); padding channels are zero everywhere.
    x_flat = jnp.pad(x_nchw.reshape(N, C, HW).astype(jnp.float32),
                     ((0, 0), (0, Cp - C), (0, 0)))

    def im2col_w(w):
        # OIHW -> (Cp, 9*Cp) tap-major (kh, kw, cin), bf16 for the MXU.
        w = jnp.transpose(w, (0, 2, 3, 1))                       # (O, kh, kw, I)
        w = jnp.pad(w, ((0, Cp - w.shape[0]), (0, 0), (0, 0),
                        (0, Cp - w.shape[3])))
        return w.reshape(Cp, 9 * Cp).astype(jnp.bfloat16)

    w1m = im2col_w(w1_oihw)
    w2m = im2col_w(w2_oihw)

    def pad_c(v):
        return jnp.pad(v.astype(jnp.float32), (0, Cp - C))

    params = jnp.stack(
        [pad_c(scale1), pad_c(bias1), pad_c(scale2), pad_c(bias2)],
        axis=0).reshape(4, Cp, 1)

    # Per-tap border-validity masks (zero padding of the SAME conv); the
    # shifts wrap around the flattened image, these zero the wrapped / out of
    # image positions.
    pos = np.arange(HW)
    row, col = pos // W, pos % W
    masks = np.ones((9, 1, HW), np.float32)
    t = 0
    for dh in (-1, 0, 1):
        for dw in (-1, 0, 1):
            m = np.ones(HW, bool)
            if dh == -1:
                m &= row >= 1
            if dh == 1:
                m &= row <= H - 2
            if dw == -1:
                m &= col >= 1
            if dw == 1:
                m &= col <= W - 2
            masks[t, 0] = m
            t += 1
    masks = jnp.asarray(masks)

    nb = batch_block
    kernel = functools.partial(_basic_block_kernel, width=W)

    out_flat = pl.pallas_call(
        kernel,
        out_shape=jax.ShapeDtypeStruct((N, Cp, HW), jnp.float32),
        grid_spec=pltpu.PrefetchScalarGridSpec(
            num_scalar_prefetch=0,
            grid=(N // nb,),
            in_specs=[
                pl.BlockSpec((nb, Cp, HW), lambda n: (n, 0, 0)),
                pl.BlockSpec((Cp, 9 * Cp), lambda n: (0, 0)),
                pl.BlockSpec((Cp, 9 * Cp), lambda n: (0, 0)),
                pl.BlockSpec((4, Cp, 1), lambda n: (0, 0, 0)),
                pl.BlockSpec((9, 1, HW), lambda n: (0, 0, 0)),
            ],
            out_specs=pl.BlockSpec((nb, Cp, HW), lambda n: (n, 0, 0)),
        ),
        compiler_params=pltpu.CompilerParams(
            dimension_semantics=("parallel",)),
    )(x_flat, w1m, w2m, params, masks)

    return out_flat[:, :C, :].reshape(N, C, H, W)


def basic_block_ref(x, w1, w2, s1, b1, s2, b2):
    """Pure-JAX reference (same eval-mode BN semantics), NCHW."""
    def bn_relu(h, s, b):
        h = h * s.reshape(1, -1, 1, 1) + b.reshape(1, -1, 1, 1)
        return jnp.where(h > 0, h, NEG_SLOPE * h)

    dn = ("NCHW", "OIHW", "NCHW")
    h = bn_relu(x, s1, b1)
    h = lax.conv_general_dilated(h, w1, (1, 1), "SAME", dimension_numbers=dn)
    h = bn_relu(h, s2, b2)
    h = lax.conv_general_dilated(h, w2, (1, 1), "SAME", dimension_numbers=dn)
    return h + x


def fold_bn(gamma, beta, running_mean, running_var, eps=BN_EPS):
    scale = gamma / jnp.sqrt(running_var + eps)
    bias = beta - running_mean * scale
    return scale, bias


if __name__ == "__main__":
    # Small shapes consistent with BasicBlock(inplanes=4, planes=4, stride=1).
    N, C, H, W = 2, 4, 16, 16
    key = jax.random.PRNGKey(0)
    ks = jax.random.split(key, 11)

    x = jax.random.normal(ks[0], (N, C, H, W), jnp.float32)

    # conv weights (PyTorch OIHW, bias=False)
    w1 = 0.1 * jax.random.normal(ks[1], (C, C, 3, 3), jnp.float32)
    w2 = 0.1 * jax.random.normal(ks[2], (C, C, 3, 3), jnp.float32)

    # BatchNorm parameters + running stats (deterministic synthetic values)
    g1 = 1.0 + 0.1 * jax.random.normal(ks[3], (C,), jnp.float32)
    be1 = 0.1 * jax.random.normal(ks[4], (C,), jnp.float32)
    rm1 = 0.1 * jax.random.normal(ks[5], (C,), jnp.float32)
    rv1 = jax.random.uniform(ks[6], (C,), jnp.float32, 0.5, 1.5)
    g2 = 1.0 + 0.1 * jax.random.normal(ks[7], (C,), jnp.float32)
    be2 = 0.1 * jax.random.normal(ks[8], (C,), jnp.float32)
    rm2 = 0.1 * jax.random.normal(ks[9], (C,), jnp.float32)
    rv2 = jax.random.uniform(ks[10], (C,), jnp.float32, 0.5, 1.5)

    s1, b1 = fold_bn(g1, be1, rm1, rv1)
    s2, b2 = fold_bn(g2, be2, rm2, rv2)

    out = jax.block_until_ready(basic_block_pallas(x, w1, w2, s1, b1, s2, b2))
    ref = jax.block_until_ready(basic_block_ref(x, w1, w2, s1, b1, s2, b2))

    # bf16 MXU operands -> slightly looser tolerance than pure f32.
    np.testing.assert_allclose(np.asarray(out), np.asarray(ref),
                               rtol=5e-2, atol=5e-2)

    print("KERNEL_OK")
</pallas_src>

<mosaic_0001>
module attributes {stable_mosaic.version = 11 : i64} {
  func.func @_basic_block_kernel(%arg0: i32, %arg1: memref<1x8x256xf32, #tpu.memory_space<vmem>>, %arg2: memref<8x72xbf16, #tpu.memory_space<vmem>>, %arg3: memref<8x72xbf16, #tpu.memory_space<vmem>>, %arg4: memref<4x8x1xf32, #tpu.memory_space<vmem>>, %arg5: memref<9x1x256xf32, #tpu.memory_space<vmem>>, %arg6: memref<1x8x256xf32, #tpu.memory_space<vmem>>) attributes {dimension_semantics = [#tpu.dimension_semantics<parallel>], iteration_bounds = array<i64: 2>, scalar_prefetch = 0 : i64, scratch_operands = 0 : i64, tpu.core_type = #tpu.core_type<tc>, window_params = [{transform_indices = @transform_0, window_bounds = array<i64: 1, 8, 256>}, {pipeline_mode = #tpu.pipeline_mode<synchronous>, transform_indices = @transform_1, window_bounds = array<i64: 8, 72>}, {pipeline_mode = #tpu.pipeline_mode<synchronous>, transform_indices = @transform_2, window_bounds = array<i64: 8, 72>}, {pipeline_mode = #tpu.pipeline_mode<synchronous>, transform_indices = @transform_3, window_bounds = array<i64: 4, 8, 1>}, {pipeline_mode = #tpu.pipeline_mode<synchronous>, transform_indices = @transform_4, window_bounds = array<i64: 9, 1, 256>}, {transform_indices = @transform_5, window_bounds = array<i64: 1, 8, 256>}]} {
    %c0 = arith.constant 0 : index
    %c0_0 = arith.constant 0 : index
    %c0_1 = arith.constant 0 : index
    %0 = vector.load %arg4[%c0, %c0_0, %c0_1] : memref<4x8x1xf32, #tpu.memory_space<vmem>>, vector<1x8x1xf32>
    %1 = vector.shape_cast %0 : vector<1x8x1xf32> to vector<8x1xf32>
    %c1 = arith.constant 1 : index
    %c0_2 = arith.constant 0 : index
    %c0_3 = arith.constant 0 : index
    %2 = vector.load %arg4[%c1, %c0_2, %c0_3] : memref<4x8x1xf32, #tpu.memory_space<vmem>>, vector<1x8x1xf32>
    %3 = vector.shape_cast %2 : vector<1x8x1xf32> to vector<8x1xf32>
    %c2 = arith.constant 2 : index
    %c0_4 = arith.constant 0 : index
    %c0_5 = arith.constant 0 : index
    %4 = vector.load %arg4[%c2, %c0_4, %c0_5] : memref<4x8x1xf32, #tpu.memory_space<vmem>>, vector<1x8x1xf32>
    %5 = vector.shape_cast %4 : vector<1x8x1xf32> to vector<8x1xf32>
    %c3 = arith.constant 3 : index
    %c0_6 = arith.constant 0 : index
    %c0_7 = arith.constant 0 : index
    %6 = vector.load %arg4[%c3, %c0_6, %c0_7] : memref<4x8x1xf32, #tpu.memory_space<vmem>>, vector<1x8x1xf32>
    %7 = vector.shape_cast %6 : vector<1x8x1xf32> to vector<8x1xf32>
    %c0_8 = arith.constant 0 : index
    %c0_9 = arith.constant 0 : index
    %c0_10 = arith.constant 0 : index
    %8 = vector.load %arg1[%c0_8, %c0_9, %c0_10] : memref<1x8x256xf32, #tpu.memory_space<vmem>>, vector<1x8x256xf32>
    %9 = vector.shape_cast %8 : vector<1x8x256xf32> to vector<8x256xf32>
    %10 = vector.broadcast %1 : vector<8x1xf32> to vector<8x256xf32>
    %11 = arith.mulf %9, %10 : vector<8x256xf32>
    %12 = vector.broadcast %3 : vector<8x1xf32> to vector<8x256xf32>
    %13 = arith.addf %11, %12 : vector<8x256xf32>
    %cst = arith.constant 1.000000e-01 : f32
    %14 = vector.broadcast %cst : f32 to vector<8x256xf32>
    %15 = arith.mulf %14, %13 : vector<8x256xf32>
    %16 = arith.maximumf %13, %15 : vector<8x256xf32>
    %17 = vector.extract_strided_slice %16 {offsets = [0, 239], sizes = [8, 17], strides = [1, 1]} : vector<8x256xf32> to vector<8x17xf32>
    %18 = vector.extract_strided_slice %16 {offsets = [0, 0], sizes = [8, 239], strides = [1, 1]} : vector<8x256xf32> to vector<8x239xf32>
    %19 = tpu.concatenate %17, %18 in 1 : vector<8x17xf32>, vector<8x239xf32> -> vector<8x256xf32>
    %c0_11 = arith.constant 0 : index
    %c0_12 = arith.constant 0 : index
    %c0_13 = arith.constant 0 : index
    %20 = vector.load %arg5[%c0_11, %c0_12, %c0_13] : memref<9x1x256xf32, #tpu.memory_space<vmem>>, vector<1x1x256xf32>
    %21 = vector.shape_cast %20 : vector<1x1x256xf32> to vector<1x256xf32>
    %22 = vector.broadcast %21 : vector<1x256xf32> to vector<8x256xf32>
    %23 = arith.mulf %19, %22 : vector<8x256xf32>
    %24 = vector.extract_strided_slice %16 {offsets = [0, 240], sizes = [8, 16], strides = [1, 1]} : vector<8x256xf32> to vector<8x16xf32>
    %25 = vector.extract_strided_slice %16 {offsets = [0, 0], sizes = [8, 240], strides = [1, 1]} : vector<8x256xf32> to vector<8x240xf32>
    %26 = tpu.concatenate %24, %25 in 1 : vector<8x16xf32>, vector<8x240xf32> -> vector<8x256xf32>
    %c1_14 = arith.constant 1 : index
    %c0_15 = arith.constant 0 : index
    %c0_16 = arith.constant 0 : index
    %27 = vector.load %arg5[%c1_14, %c0_15, %c0_16] : memref<9x1x256xf32, #tpu.memory_space<vmem>>, vector<1x1x256xf32>
    %28 = vector.shape_cast %27 : vector<1x1x256xf32> to vector<1x256xf32>
    %29 = vector.broadcast %28 : vector<1x256xf32> to vector<8x256xf32>
    %30 = arith.mulf %26, %29 : vector<8x256xf32>
    %31 = vector.extract_strided_slice %16 {offsets = [0, 241], sizes = [8, 15], strides = [1, 1]} : vector<8x256xf32> to vector<8x15xf32>
    %32 = vector.extract_strided_slice %16 {offsets = [0, 0], sizes = [8, 241], strides = [1, 1]} : vector<8x256xf32> to vector<8x241xf32>
    %33 = tpu.concatenate %31, %32 in 1 : vector<8x15xf32>, vector<8x241xf32> -> vector<8x256xf32>
    %c2_17 = arith.constant 2 : index
    %c0_18 = arith.constant 0 : index
    %c0_19 = arith.constant 0 : index
    %34 = vector.load %arg5[%c2_17, %c0_18, %c0_19] : memref<9x1x256xf32, #tpu.memory_space<vmem>>, vector<1x1x256xf32>
    %35 = vector.shape_cast %34 : vector<1x1x256xf32> to vector<1x256xf32>
    %36 = vector.broadcast %35 : vector<1x256xf32> to vector<8x256xf32>
    %37 = arith.mulf %33, %36 : vector<8x256xf32>
    %38 = vector.extract_strided_slice %16 {offsets = [0, 255], sizes = [8, 1], strides = [1, 1]} : vector<8x256xf32> to vector<8x1xf32>
    %39 = vector.extract_strided_slice %16 {offsets = [0, 0], sizes = [8, 255], strides = [1, 1]} : vector<8x256xf32> to vector<8x255xf32>
    %40 = tpu.concatenate %38, %39 in 1 : vector<8x1xf32>, vector<8x255xf32> -> vector<8x256xf32>
    %c3_20 = arith.constant 3 : index
    %c0_21 = arith.constant 0 : index
    %c0_22 = arith.constant 0 : index
    %41 = vector.load %arg5[%c3_20, %c0_21, %c0_22] : memref<9x1x256xf32, #tpu.memory_space<vmem>>, vector<1x1x256xf32>
    %42 = vector.shape_cast %41 : vector<1x1x256xf32> to vector<1x256xf32>
    %43 = vector.broadcast %42 : vector<1x256xf32> to vector<8x256xf32>
    %44 = arith.mulf %40, %43 : vector<8x256xf32>
    %45 = vector.extract_strided_slice %16 {offsets = [0, 1], sizes = [8, 255], strides = [1, 1]} : vector<8x256xf32> to vector<8x255xf32>
    %46 = vector.extract_strided_slice %16 {offsets = [0, 0], sizes = [8, 1], strides = [1, 1]} : vector<8x256xf32> to vector<8x1xf32>
    %47 = tpu.concatenate %45, %46 in 1 : vector<8x255xf32>, vector<8x1xf32> -> vector<8x256xf32>
    %c5 = arith.constant 5 : index
    %c0_23 = arith.constant 0 : index
    %c0_24 = arith.constant 0 : index
    %48 = vector.load %arg5[%c5, %c0_23, %c0_24] : memref<9x1x256xf32, #tpu.memory_space<vmem>>, vector<1x1x256xf32>
    %49 = vector.shape_cast %48 : vector<1x1x256xf32> to vector<1x256xf32>
    %50 = vector.broadcast %49 : vector<1x256xf32> to vector<8x256xf32>
    %51 = arith.mulf %47, %50 : vector<8x256xf32>
    %52 = vector.extract_strided_slice %16 {offsets = [0, 15], sizes = [8, 241], strides = [1, 1]} : vector<8x256xf32> to vector<8x241xf32>
    %53 = vector.extract_strided_slice %16 {offsets = [0, 0], sizes = [8, 15], strides = [1, 1]} : vector<8x256xf32> to vector<8x15xf32>
    %54 = tpu.concatenate %52, %53 in 1 : vector<8x241xf32>, vector<8x15xf32> -> vector<8x256xf32>
    %c6 = arith.constant 6 : index
    %c0_25 = arith.constant 0 : index
    %c0_26 = arith.constant 0 : index
    %55 = vector.load %arg5[%c6, %c0_25, %c0_26] : memref<9x1x256xf32, #tpu.memory_space<vmem>>, vector<1x1x256xf32>
    %56 = vector.shape_cast %55 : vector<1x1x256xf32> to vector<1x256xf32>
    %57 = vector.broadcast %56 : vector<1x256xf32> to vector<8x256xf32>
    %58 = arith.mulf %54, %57 : vector<8x256xf32>
    %59 = vector.extract_strided_slice %16 {offsets = [0, 16], sizes = [8, 240], strides = [1, 1]} : vector<8x256xf32> to vector<8x240xf32>
    %60 = vector.extract_strided_slice %16 {offsets = [0, 0], sizes = [8, 16], strides = [1, 1]} : vector<8x256xf32> to vector<8x16xf32>
    %61 = tpu.concatenate %59, %60 in 1 : vector<8x240xf32>, vector<8x16xf32> -> vector<8x256xf32>
    %c7 = arith.constant 7 : index
    %c0_27 = arith.constant 0 : index
    %c0_28 = arith.constant 0 : index
    %62 = vector.load %arg5[%c7, %c0_27, %c0_28] : memref<9x1x256xf32, #tpu.memory_space<vmem>>, vector<1x1x256xf32>
    %63 = vector.shape_cast %62 : vector<1x1x256xf32> to vector<1x256xf32>
    %64 = vector.broadcast %63 : vector<1x256xf32> to vector<8x256xf32>
    %65 = arith.mulf %61, %64 : vector<8x256xf32>
    %66 = vector.extract_strided_slice %16 {offsets = [0, 17], sizes = [8, 239], strides = [1, 1]} : vector<8x256xf32> to vector<8x239xf32>
    %67 = vector.extract_strided_slice %16 {offsets = [0, 0], sizes = [8, 17], strides = [1, 1]} : vector<8x256xf32> to vector<8x17xf32>
    %68 = tpu.concatenate %66, %67 in 1 : vector<8x239xf32>, vector<8x17xf32> -> vector<8x256xf32>
    %c8 = arith.constant 8 : index
    %c0_29 = arith.constant 0 : index
    %c0_30 = arith.constant 0 : index
    %69 = vector.load %arg5[%c8, %c0_29, %c0_30] : memref<9x1x256xf32, #tpu.memory_space<vmem>>, vector<1x1x256xf32>
    %70 = vector.shape_cast %69 : vector<1x1x256xf32> to vector<1x256xf32>
    %71 = vector.broadcast %70 : vector<1x256xf32> to vector<8x256xf32>
    %72 = arith.mulf %68, %71 : vector<8x256xf32>
    %73 = tpu.concatenate %23, %30, %37, %44, %16, %51, %58, %65, %72 in 0 : vector<8x256xf32>, vector<8x256xf32>, vector<8x256xf32>, vector<8x256xf32>, vector<8x256xf32>, vector<8x256xf32>, vector<8x256xf32>, vector<8x256xf32>, vector<8x256xf32> -> vector<72x256xf32>
    %74 = arith.truncf %73 : vector<72x256xf32> to vector<72x256xbf16>
    %c0_31 = arith.constant 0 : index
    %c0_32 = arith.constant 0 : index
    %75 = vector.load %arg2[%c0_31, %c0_32] : memref<8x72xbf16, #tpu.memory_space<vmem>>, vector<8x72xbf16>
    %cst_33 = arith.constant dense<0.000000e+00> : vector<8x256xf32>
    %76 = tpu.matmul %75, %74, %cst_33 {dimension_numbers = #tpu.dot_dimension_numbers<[1], [0], [0], [1], [0, 0, 1, 1], [], []>} : vector<8x72xbf16>, vector<72x256xbf16>, vector<8x256xf32> -> vector<8x256xf32>
    %77 = vector.broadcast %5 : vector<8x1xf32> to vector<8x256xf32>
    %78 = arith.mulf %76, %77 : vector<8x256xf32>
    %79 = vector.broadcast %7 : vector<8x1xf32> to vector<8x256xf32>
    %80 = arith.addf %78, %79 : vector<8x256xf32>
    %cst_34 = arith.constant 1.000000e-01 : f32
    %81 = vector.broadcast %cst_34 : f32 to vector<8x256xf32>
    %82 = arith.mulf %81, %80 : vector<8x256xf32>
    %83 = arith.maximumf %80, %82 : vector<8x256xf32>
    %84 = vector.extract_strided_slice %83 {offsets = [0, 239], sizes = [8, 17], strides = [1, 1]} : vector<8x256xf32> to vector<8x17xf32>
    %85 = vector.extract_strided_slice %83 {offsets = [0, 0], sizes = [8, 239], strides = [1, 1]} : vector<8x256xf32> to vector<8x239xf32>
    %86 = tpu.concatenate %84, %85 in 1 : vector<8x17xf32>, vector<8x239xf32> -> vector<8x256xf32>
    %c0_35 = arith.constant 0 : index
    %c0_36 = arith.constant 0 : index
    %c0_37 = arith.constant 0 : index
    %87 = vector.load %arg5[%c0_35, %c0_36, %c0_37] : memref<9x1x256xf32, #tpu.memory_space<vmem>>, vector<1x1x256xf32>
    %88 = vector.shape_cast %87 : vector<1x1x256xf32> to vector<1x256xf32>
    %89 = vector.broadcast %88 : vector<1x256xf32> to vector<8x256xf32>
    %90 = arith.mulf %86, %89 : vector<8x256xf32>
    %91 = vector.extract_strided_slice %83 {offsets = [0, 240], sizes = [8, 16], strides = [1, 1]} : vector<8x256xf32> to vector<8x16xf32>
    %92 = vector.extract_strided_slice %83 {offsets = [0, 0], sizes = [8, 240], strides = [1, 1]} : vector<8x256xf32> to vector<8x240xf32>
    %93 = tpu.concatenate %91, %92 in 1 : vector<8x16xf32>, vector<8x240xf32> -> vector<8x256xf32>
    %c1_38 = arith.constant 1 : index
    %c0_39 = arith.constant 0 : index
    %c0_40 = arith.constant 0 : index
    %94 = vector.load %arg5[%c1_38, %c0_39, %c0_40] : memref<9x1x256xf32, #tpu.memory_space<vmem>>, vector<1x1x256xf32>
    %95 = vector.shape_cast %94 : vector<1x1x256xf32> to vector<1x256xf32>
    %96 = vector.broadcast %95 : vector<1x256xf32> to vector<8x256xf32>
    %97 = arith.mulf %93, %96 : vector<8x256xf32>
    %98 = vector.extract_strided_slice %83 {offsets = [0, 241], sizes = [8, 15], strides = [1, 1]} : vector<8x256xf32> to vector<8x15xf32>
    %99 = vector.extract_strided_slice %83 {offsets = [0, 0], sizes = [8, 241], strides = [1, 1]} : vector<8x256xf32> to vector<8x241xf32>
    %100 = tpu.concatenate %98, %99 in 1 : vector<8x15xf32>, vector<8x241xf32> -> vector<8x256xf32>
    %c2_41 = arith.constant 2 : index
    %c0_42 = arith.constant 0 : index
    %c0_43 = arith.constant 0 : index
    %101 = vector.load %arg5[%c2_41, %c0_42, %c0_43] : memref<9x1x256xf32, #tpu.memory_space<vmem>>, vector<1x1x256xf32>
    %102 = vector.shape_cast %101 : vector<1x1x256xf32> to vector<1x256xf32>
    %103 = vector.broadcast %102 : vector<1x256xf32> to vector<8x256xf32>
    %104 = arith.mulf %100, %103 : vector<8x256xf32>
    %105 = vector.extract_strided_slice %83 {offsets = [0, 255], sizes = [8, 1], strides = [1, 1]} : vector<8x256xf32> to vector<8x1xf32>
    %106 = vector.extract_strided_slice %83 {offsets = [0, 0], sizes = [8, 255], strides = [1, 1]} : vector<8x256xf32> to vector<8x255xf32>
    %107 = tpu.concatenate %105, %106 in 1 : vector<8x1xf32>, vector<8x255xf32> -> vector<8x256xf32>
    %c3_44 = arith.constant 3 : index
    %c0_45 = arith.constant 0 : index
    %c0_46 = arith.constant 0 : index
    %108 = vector.load %arg5[%c3_44, %c0_45, %c0_46] : memref<9x1x256xf32, #tpu.memory_space<vmem>>, vector<1x1x256xf32>
    %109 = vector.shape_cast %108 : vector<1x1x256xf32> to vector<1x256xf32>
    %110 = vector.broadcast %109 : vector<1x256xf32> to vector<8x256xf32>
    %111 = arith.mulf %107, %110 : vector<8x256xf32>
    %112 = vector.extract_strided_slice %83 {offsets = [0, 1], sizes = [8, 255], strides = [1, 1]} : vector<8x256xf32> to vector<8x255xf32>
    %113 = vector.extract_strided_slice %83 {offsets = [0, 0], sizes = [8, 1], strides = [1, 1]} : vector<8x256xf32> to vector<8x1xf32>
    %114 = tpu.concatenate %112, %113 in 1 : vector<8x255xf32>, vector<8x1xf32> -> vector<8x256xf32>
    %c5_47 = arith.constant 5 : index
    %c0_48 = arith.constant 0 : index
    %c0_49 = arith.constant 0 : index
    %115 = vector.load %arg5[%c5_47, %c0_48, %c0_49] : memref<9x1x256xf32, #tpu.memory_space<vmem>>, vector<1x1x256xf32>
    %116 = vector.shape_cast %115 : vector<1x1x256xf32> to vector<1x256xf32>
    %117 = vector.broadcast %116 : vector<1x256xf32> to vector<8x256xf32>
    %118 = arith.mulf %114, %117 : vector<8x256xf32>
    %119 = vector.extract_strided_slice %83 {offsets = [0, 15], sizes = [8, 241], strides = [1, 1]} : vector<8x256xf32> to vector<8x241xf32>
    %120 = vector.extract_strided_slice %83 {offsets = [0, 0], sizes = [8, 15], strides = [1, 1]} : vector<8x256xf32> to vector<8x15xf32>
    %121 = tpu.concatenate %119, %120 in 1 : vector<8x241xf32>, vector<8x15xf32> -> vector<8x256xf32>
    %c6_50 = arith.constant 6 : index
    %c0_51 = arith.constant 0 : index
    %c0_52 = arith.constant 0 : index
    %122 = vector.load %arg5[%c6_50, %c0_51, %c0_52] : memref<9x1x256xf32, #tpu.memory_space<vmem>>, vector<1x1x256xf32>
    %123 = vector.shape_cast %122 : vector<1x1x256xf32> to vector<1x256xf32>
    %124 = vector.broadcast %123 : vector<1x256xf32> to vector<8x256xf32>
    %125 = arith.mulf %121, %124 : vector<8x256xf32>
    %126 = vector.extract_strided_slice %83 {offsets = [0, 16], sizes = [8, 240], strides = [1, 1]} : vector<8x256xf32> to vector<8x240xf32>
    %127 = vector.extract_strided_slice %83 {offsets = [0, 0], sizes = [8, 16], strides = [1, 1]} : vector<8x256xf32> to vector<8x16xf32>
    %128 = tpu.concatenate %126, %127 in 1 : vector<8x240xf32>, vector<8x16xf32> -> vector<8x256xf32>
    %c7_53 = arith.constant 7 : index
    %c0_54 = arith.constant 0 : index
    %c0_55 = arith.constant 0 : index
    %129 = vector.load %arg5[%c7_53, %c0_54, %c0_55] : memref<9x1x256xf32, #tpu.memory_space<vmem>>, vector<1x1x256xf32>
    %130 = vector.shape_cast %129 : vector<1x1x256xf32> to vector<1x256xf32>
    %131 = vector.broadcast %130 : vector<1x256xf32> to vector<8x256xf32>
    %132 = arith.mulf %128, %131 : vector<8x256xf32>
    %133 = vector.extract_strided_slice %83 {offsets = [0, 17], sizes = [8, 239], strides = [1, 1]} : vector<8x256xf32> to vector<8x239xf32>
    %134 = vector.extract_strided_slice %83 {offsets = [0, 0], sizes = [8, 17], strides = [1, 1]} : vector<8x256xf32> to vector<8x17xf32>
    %135 = tpu.concatenate %133, %134 in 1 : vector<8x239xf32>, vector<8x17xf32> -> vector<8x256xf32>
    %c8_56 = arith.constant 8 : index
    %c0_57 = arith.constant 0 : index
    %c0_58 = arith.constant 0 : index
    %136 = vector.load %arg5[%c8_56, %c0_57, %c0_58] : memref<9x1x256xf32, #tpu.memory_space<vmem>>, vector<1x1x256xf32>
    %137 = vector.shape_cast %136 : vector<1x1x256xf32> to vector<1x256xf32>
    %138 = vector.broadcast %137 : vector<1x256xf32> to vector<8x256xf32>
    %139 = arith.mulf %135, %138 : vector<8x256xf32>
    %140 = tpu.concatenate %90, %97, %104, %111, %83, %118, %125, %132, %139 in 0 : vector<8x256xf32>, vector<8x256xf32>, vector<8x256xf32>, vector<8x256xf32>, vector<8x256xf32>, vector<8x256xf32>, vector<8x256xf32>, vector<8x256xf32>, vector<8x256xf32> -> vector<72x256xf32>
    %141 = arith.truncf %140 : vector<72x256xf32> to vector<72x256xbf16>
    %c0_59 = arith.constant 0 : index
    %c0_60 = arith.constant 0 : index
    %142 = vector.load %arg3[%c0_59, %c0_60] : memref<8x72xbf16, #tpu.memory_space<vmem>>, vector<8x72xbf16>
    %cst_61 = arith.constant dense<0.000000e+00> : vector<8x256xf32>
    %143 = tpu.matmul %142, %141, %cst_61 {dimension_numbers = #tpu.dot_dimension_numbers<[1], [0], [0], [1], [0, 0, 1, 1], [], []>} : vector<8x72xbf16>, vector<72x256xbf16>, vector<8x256xf32> -> vector<8x256xf32>
    %c0_62 = arith.constant 0 : index
    %c0_63 = arith.constant 0 : index
    %c0_64 = arith.constant 0 : index
    %144 = vector.load %arg1[%c0_62, %c0_63, %c0_64] : memref<1x8x256xf32, #tpu.memory_space<vmem>>, vector<1x8x256xf32>
    %145 = vector.shape_cast %144 : vector<1x8x256xf32> to vector<8x256xf32>
    %146 = arith.addf %143, %145 : vector<8x256xf32>
    %c0_65 = arith.constant 0 : index
    %c0_66 = arith.constant 0 : index
    %c0_67 = arith.constant 0 : index
    %147 = vector.load %arg6[%c0_65, %c0_66, %c0_67] : memref<1x8x256xf32, #tpu.memory_space<vmem>>, vector<1x8x256xf32>
    %148 = vector.shape_cast %147 : vector<1x8x256xf32> to vector<8x256xf32>
    %149 = vector.shape_cast %146 : vector<8x256xf32> to vector<1x8x256xf32>
    tpu.vector_store %arg6[%c0_65, %c0_66, %c0_67], %149 {strides = array<i32>} : memref<1x8x256xf32, #tpu.memory_space<vmem>>, vector<1x8x256xf32>,
    return
  }
  func.func @transform_0(%arg0: i32) -> (i32, i32, i32) {
    %c0_i32 = arith.constant 0 : i32
    %c0_i32_0 = arith.constant 0 : i32
    %c0_i32_1 = arith.constant 0 : i32
    return %arg0, %c0_i32, %c0_i32_0 : i32, i32, i32
  }
  func.func @transform_1(%arg0: i32) -> (i32, i32) {
    %c0_i32 = arith.constant 0 : i32
    %c0_i32_0 = arith.constant 0 : i32
    %c0_i32_1 = arith.constant 0 : i32
    return %c0_i32, %c0_i32_0 : i32, i32
  }
  func.func @transform_2(%arg0: i32) -> (i32, i32) {
    %c0_i32 = arith.constant 0 : i32
    %c0_i32_0 = arith.constant 0 : i32
    %c0_i32_1 = arith.constant 0 : i32
    return %c0_i32, %c0_i32_0 : i32, i32
  }
  func.func @transform_3(%arg0: i32) -> (i32, i32, i32) {
    %c0_i32 = arith.constant 0 : i32
    %c0_i32_0 = arith.constant 0 : i32
    %c0_i32_1 = arith.constant 0 : i32
    %c0_i32_2 = arith.constant 0 : i32
    return %c0_i32, %c0_i32_0, %c0_i32_1 : i32, i32, i32
  }
  func.func @transform_4(%arg0: i32) -> (i32, i32, i32) {
    %c0_i32 = arith.constant 0 : i32
    %c0_i32_0 = arith.constant 0 : i32
    %c0_i32_1 = arith.constant 0 : i32
    %c0_i32_2 = arith.constant 0 : i32
    return %c0_i32, %c0_i32_0, %c0_i32_1 : i32, i32, i32
  }
  func.func @transform_5(%arg0: i32) -> (i32, i32, i32) {
    %c0_i32 = arith.constant 0 : i32
    %c0_i32_0 = arith.constant 0 : i32
    %c0_i32_1 = arith.constant 0 : i32
    return %arg0, %c0_i32, %c0_i32_0 : i32, i32, i32
  }
}

</mosaic_0001>

<llo_original>
// kernel: tpu_custom_call.1
$region0: #{tpu_custom_call.1}
  #allocation0 [shape = 'u32[]', space=smem, size = 0x4, offset = 0x4, fixed_abs, tag = 'smem constant byte address 0x4 - core index']
  #allocation1 [shape = 'u32[144,128]{1,0:T(1,128)}', space=vmem, size = 0x12000, scoped, tag = 'internal scratch']
  %s0 = inlined_call_operand.vmem [shape: f32[2,8,256], index: 0, kind: input, shape index: {}]
  %s1 = inlined_call_operand.hbm [shape: bf16[8,72], index: 1, kind: input, shape index: {}]
  %s2 = inlined_call_operand.hbm [shape: bf16[8,72], index: 2, kind: input, shape index: {}]
  %s3 = inlined_call_operand.vmem [shape: f32[4,8,1], index: 3, kind: input, shape index: {}]
  %s4 = inlined_call_operand.vmem [shape: f32[9,1,256], index: 4, kind: input, shape index: {}]
  %s5 = inlined_call_operand.hbm [shape: f32[2,8,256], index: 5, kind: output, shape index: {}]
  %s6 = sld [smem:[#allocation0]]
  $region61: #{tpu_custom_call.1} parent=0
    _
  %s8 = ssub.s32 1, %s6
  %s9 = scalar_select 0, %s8, %s6
  $region1: #{tpu_custom_call.1} parent=0
    #allocation2 [shape = 'u8[2048]{0}', space=vmem, size = 0x800, scoped, tag = 'input window, operand 1, single buffered']
    #allocation3 [shape = 's32[2]{0}', space=sflag, size = 0x8, scoped, tag = 'scoped memory for tpu_custom_call.1']
    #allocation4 [shape = 's32[2]{0}', space=sflag, size = 0x8, scoped, tag = 'scoped memory for tpu_custom_call.1']
    #allocation5 [shape = 'u8[2048]{0}', space=vmem, size = 0x800, scoped, tag = 'input window, operand 2, single buffered']
    #allocation6 [shape = 's32[1]{0}', space=sflag, size = 0x4, scoped, tag = 'scoped memory for tpu_custom_call.1']
    #allocation7 [shape = 'u8[16384]{0}', space=vmem, size = 0x4000, scoped, tag = 'output window, operand 0']
    %10 = vsyncpa [#allocation3], 0
    %11 = vsyncpa [#allocation6], 0
    %12 = vsyncpa [#allocation4], 0
    %s13 = scalar_lea.sflag [#allocation4], 1
    %14 = vsyncpa %s13, 0
    loop: start=0, step=1, limit=4
    $region2: #{tpu_custom_call.1} parent=1 // loop_pre_header
      _
    $region3: #{tpu_custom_call.1} parent=1 // loop_header
      %s16 = sphi 0, %s20
      %p17 = scmp.ge.s32.totalorder %s16, 4
      %s26 = sphi 0, %s28
      %s29 = sphi 0, %s26
      %s30 = sphi 0, %s29
      %s46 = sphi 0, %s30
      %s50 = sphi 0, %s50
      %s52 = sphi 0, %s50
      %s53 = sphi 0, %s52
      %s67 = sphi 0, %s53
      %s71 = sphi 0, %s71
      %s73 = sphi 0, %s71
      %s74 = sphi 0, %s73
      %s88 = sphi 0, %s74
      %s92 = sphi 0, %s92
      %s94 = sphi 0, %s92
      %s95 = sphi 0, %s94
      %s109 = sphi 0, %s95
      %s113 = sphi 0, %s113
      %s115 = sphi 0, %s113
      %s116 = sphi 0, %s115
      %s130 = sphi 0, %s116
      %s136 = sphi 0, %s138
      %s139 = sphi 0, %s136
      %s140 = sphi 0, %s139
      %s156 = sphi 0, %s140
    $region4: #{tpu_custom_call.1} parent=1 // loop_header_branch
      %19 = sbr.rel (%p17) target = $region8
    $region5: #{tpu_custom_call.1} parent=1 // loop_body
      %s21 = ssub.s32 %s16, 1
      %s22 = ssub.s32 %s16, 2
      %s23 = sadd.s32 %s16, 1
      %s24 = ssub.s32 %s16, %s23
      %p25 = scmp.eq.s32.totalorder %s24, 0
      %s27 = sadd.s32 %s26, 1
      %s28 = scalar_select %p25, %s26, %s27
      %p31 = pneg %p25
      %p32 = scmp.eq.s32.totalorder %s16, 1
      %p33 = por %p31, %p32
      %p34 = scmp.ne.s32.totalorder %s26, %s29
      %p35 = scmp.eq.s32.totalorder %s16, 0
      %p36 = por %p34, %p35
      %p37 = scmp.ne.s32.totalorder %s26, %s29
      %p38 = scmp.eq.s32.totalorder %s21, 1
      %p39 = por %p37, %p38
      %p40 = scmp.ne.s32.totalorder %s29, %s30
      %p41 = scmp.eq.s32.totalorder %s21, 0
      %p42 = por %p40, %p41
      %p43 = scmp.ne.s32.totalorder %s29, %s30
      %p44 = scmp.eq.s32.totalorder %s22, 1
      %p45 = por %p43, %p44
      %p47 = scmp.ne.s32.totalorder %s30, %s46
      %p48 = scmp.eq.s32.totalorder %s22, 0
      %p49 = por %p47, %p48
      %s51 = sadd.s32 %s50, 1
      %p54 = scmp.eq.s32.totalorder %s16, 1
      %p55 = scmp.ne.s32.totalorder %s50, %s52
      %p56 = scmp.eq.s32.totalorder %s16, 0
      %p57 = por %p55, %p56
      %p58 = scmp.ne.s32.totalorder %s50, %s52
      %p59 = scmp.eq.s32.totalorder %s21, 1
      %p60 = por %p58, %p59
      %p61 = scmp.ne.s32.totalorder %s52, %s53
      %p62 = scmp.eq.s32.totalorder %s21, 0
      %p63 = por %p61, %p62
      %p64 = scmp.ne.s32.totalorder %s52, %s53
      %p65 = scmp.eq.s32.totalorder %s22, 1
      %p66 = por %p64, %p65
      %p68 = scmp.ne.s32.totalorder %s53, %s67
      %p69 = scmp.eq.s32.totalorder %s22, 0
      %p70 = por %p68, %p69
      %s72 = sadd.s32 %s71, 1
      %p75 = scmp.eq.s32.totalorder %s16, 1
      %p76 = scmp.ne.s32.totalorder %s71, %s73
      %p77 = scmp.eq.s32.totalorder %s16, 0
      %p78 = por %p76, %p77
      %p79 = scmp.ne.s32.totalorder %s71, %s73
      %p80 = scmp.eq.s32.totalorder %s21, 1
      %p81 = por %p79, %p80
      %p82 = scmp.ne.s32.totalorder %s73, %s74
      %p83 = scmp.eq.s32.totalorder %s21, 0
      %p84 = por %p82, %p83
      %p85 = scmp.ne.s32.totalorder %s73, %s74
      %p86 = scmp.eq.s32.totalorder %s22, 1
      %p87 = por %p85, %p86
      %p89 = scmp.ne.s32.totalorder %s74, %s88
      %p90 = scmp.eq.s32.totalorder %s22, 0
      %p91 = por %p89, %p90
      %s93 = sadd.s32 %s92, 1
      %p96 = scmp.eq.s32.totalorder %s16, 1
      %p97 = scmp.ne.s32.totalorder %s92, %s94
      %p98 = scmp.eq.s32.totalorder %s16, 0
      %p99 = por %p97, %p98
      %p100 = scmp.ne.s32.totalorder %s92, %s94
      %p101 = scmp.eq.s32.totalorder %s21, 1
      %p102 = por %p100, %p101
      %p103 = scmp.ne.s32.totalorder %s94, %s95
      %p104 = scmp.eq.s32.totalorder %s21, 0
      %p105 = por %p103, %p104
      %p106 = scmp.ne.s32.totalorder %s94, %s95
      %p107 = scmp.eq.s32.totalorder %s22, 1
      %p108 = por %p106, %p107
      %p110 = scmp.ne.s32.totalorder %s95, %s109
      %p111 = scmp.eq.s32.totalorder %s22, 0
      %p112 = por %p110, %p111
      %s114 = sadd.s32 %s113, 1
      %p117 = scmp.eq.s32.totalorder %s16, 1
      %p118 = scmp.ne.s32.totalorder %s113, %s115
      %p119 = scmp.eq.s32.totalorder %s16, 0
      %p120 = por %p118, %p119
      %p121 = scmp.ne.s32.totalorder %s113, %s115
      %p122 = scmp.eq.s32.totalorder %s21, 1
      %p123 = por %p121, %p122
      %p124 = scmp.ne.s32.totalorder %s115, %s116
      %p125 = scmp.eq.s32.totalorder %s21, 0
      %p126 = por %p124, %p125
      %p127 = scmp.ne.s32.totalorder %s115, %s116
      %p128 = scmp.eq.s32.totalorder %s22, 1
      %p129 = por %p127, %p128
      %p131 = scmp.ne.s32.totalorder %s116, %s130
      %p132 = scmp.eq.s32.totalorder %s22, 0
      %p133 = por %p131, %p132
      %s134 = ssub.s32 %s16, %s23
      %p135 = scmp.eq.s32.totalorder %s134, 0
      %s137 = sadd.s32 %s136, 1
      %s138 = scalar_select %p135, %s136, %s137
      %p141 = pneg %p135
      %p142 = scmp.eq.s32.totalorder %s16, 1
      %p143 = por %p141, %p142
      %p144 = scmp.ne.s32.totalorder %s136, %s139
      %p145 = scmp.eq.s32.totalorder %s16, 0
      %p146 = por %p144, %p145
      %p147 = scmp.ne.s32.totalorder %s136, %s139
      %p148 = scmp.eq.s32.totalorder %s21, 1
      %p149 = por %p147, %p148
      %p150 = scmp.ne.s32.totalorder %s139, %s140
      %p151 = scmp.eq.s32.totalorder %s21, 0
      %p152 = por %p150, %p151
      %p153 = scmp.ne.s32.totalorder %s139, %s140
      %p154 = scmp.eq.s32.totalorder %s22, 1
      %p155 = por %p153, %p154
      %p157 = scmp.ne.s32.totalorder %s140, %s156
      %p158 = scmp.eq.s32.totalorder %s22, 0
      %p159 = por %p157, %p158
      %p160 = scmp.le.s32.totalorder 1, %s16
      %p161 = scmp.lt.s32.totalorder %s16, 3
      %p162 = pnand %p160, %p161
      %p163 = pneg %p162
      // Predicated region
      $region9: #{tpu_custom_call.1} parent=5 // pred_check
        _
      $region10: #{tpu_custom_call.1} parent=5 // pred_check_branch
        %165 = sbr.rel (%p162) target = $region12
      $region11: #{tpu_custom_call.1} parent=5 // pred_region
        %s166 = ssub.s32 %s16, 1
        // Predicated region
        $region13: #{tpu_custom_call.1} parent=11 // pred_check
          %p167 = pneg %p63
        $region14: #{tpu_custom_call.1} parent=11 // pred_check_branch
          %169 = sbr.rel (%p167) target = $region16
        $region15: #{tpu_custom_call.1} parent=11 // pred_region
          %s171 = ssub.s32 64, 64
          %172 = vsyncadd [#allocation3], %s171
          %s174 = sshll.u32 [#allocation2], 4
          %s175 = int_to_ptr.vmem [resolvable:$true] %s174
          %177 = dma.hbm_to_vmem [thread:$0]  %s1, 64, %s175, [#allocation3]
        $region16: #{tpu_custom_call.1} parent=11 // pred_fallthru
          _
        // Predicated region
        $region17: #{tpu_custom_call.1} parent=11 // pred_check
          %p178 = pneg %p84
        $region18: #{tpu_custom_call.1} parent=11 // pred_check_branch
          %180 = sbr.rel (%p178) target = $region20
        $region19: #{tpu_custom_call.1} parent=11 // pred_region
          %s182 = ssub.s32 64, 64
          %183 = vsyncadd [#allocation6], %s182
          %s185 = sshll.u32 [#allocation5], 4
          %s186 = int_to_ptr.vmem [resolvable:$true] %s185
          %188 = dma.hbm_to_vmem [thread:$0]  %s2, 64, %s186, [#allocation6]
        $region20: #{tpu_custom_call.1} parent=11 // pred_fallthru
          _
        // Predicated region
        $region21: #{tpu_custom_call.1} parent=11 // pred_check
          %p189 = pneg %p105
        $region22: #{tpu_custom_call.1} parent=11 // pred_check_branch
          %191 = sbr.rel (%p189) target = $region24
        $region23: #{tpu_custom_call.1} parent=11 // pred_region
          _
        $region24: #{tpu_custom_call.1} parent=11 // pred_fallthru
          _
        // Predicated region
        $region25: #{tpu_custom_call.1} parent=11 // pred_check
          %p192 = pneg %p126
        $region26: #{tpu_custom_call.1} parent=11 // pred_check_branch
          %194 = sbr.rel (%p192) target = $region28
        $region27: #{tpu_custom_call.1} parent=11 // pred_region
          _
        $region28: #{tpu_custom_call.1} parent=11 // pred_fallthru
          _
      $region12: #{tpu_custom_call.1} parent=5 // pred_fallthru
        _
      %p195 = scmp.lt.s32.totalorder %s16, 2
      // Predicated region
      $region29: #{tpu_custom_call.1} parent=5 // pred_check
        %p196 = pneg %p195
      $region30: #{tpu_custom_call.1} parent=5 // pred_check_branch
        %198 = sbr.rel (%p196) target = $region32
      $region31: #{tpu_custom_call.1} parent=5 // pred_region
        // Predicated region
        $region33: #{tpu_custom_call.1} parent=31 // pred_check
          %p199 = pneg %p36
        $region34: #{tpu_custom_call.1} parent=31 // pred_check_branch
          %201 = sbr.rel (%p199) target = $region36
        $region35: #{tpu_custom_call.1} parent=31 // pred_region
          %p202 = scmp.lt.s32.totalorder %s16, 1
          %s203 = scalar_select %p202, %s16, 1
          %s204 = smul.addr %s203, 2
          %s205 = smul.addr %s204, 8
          %s206 = scalar_lea.vmem %s0, %s205
        $region36: #{tpu_custom_call.1} parent=31 // pred_fallthru
          _
      $region32: #{tpu_custom_call.1} parent=5 // pred_fallthru
        _
      %p207 = scmp.le.s32.totalorder 1, %s16
      %p208 = scmp.lt.s32.totalorder %s16, 3
      %p209 = pnand %p207, %p208
      %p210 = pneg %p209
      // Predicated region
      $region37: #{tpu_custom_call.1} parent=5 // pred_check
        _
      $region38: #{tpu_custom_call.1} parent=5 // pred_check_branch
        %212 = sbr.rel (%p209) target = $region40
      $region39: #{tpu_custom_call.1} parent=5 // pred_region
        %s213 = ssub.s32 %s16, 1
        // Predicated region
        $region41: #{tpu_custom_call.1} parent=39 // pred_check
          %p214 = pneg %p63
        $region42: #{tpu_custom_call.1} parent=39 // pred_check_branch
          %216 = sbr.rel (%p214) target = $region44
        $region43: #{tpu_custom_call.1} parent=39 // pred_region
          %217 = dma.done [#allocation3], 64
        $region44: #{tpu_custom_call.1} parent=39 // pred_fallthru
          _
        // Predicated region
        $region45: #{tpu_custom_call.1} parent=39 // pred_check
          %p218 = pneg %p84
        $region46: #{tpu_custom_call.1} parent=39 // pred_check_branch
          %220 = sbr.rel (%p218) target = $region48
        $region47: #{tpu_custom_call.1} parent=39 // pred_region
          %221 = dma.done [#allocation6], 64
        $region48: #{tpu_custom_call.1} parent=39 // pred_fallthru
          _
        %p222 = scmp.lt.s32.totalorder %s21, 1
        %s223 = scalar_select %p222, %s21, 1
        %s224 = smul.addr %s223, 2
        %s225 = smul.addr %s224, 8
        %s226 = scalar_lea.vmem %s0, %s225
        %p227 = pneg %p42
        %p228 = pneg %p39
        %p229 = pneg %p63
        %p230 = pneg %p60
        %p231 = pneg %p84
        %p232 = pneg %p81
        %p233 = pneg %p105
        %p234 = pneg %p102
        %p235 = pneg %p126
        %p236 = pneg %p123
        %p237 = pneg %p152
        %p238 = pneg %p149
        %s239 = sand.u32 %s139, 1
        %s240 = scalar_lea.sflag [#allocation4], %s239
        %s241 = sand.u32 %s139, 1
        %s242 = smul.addr %s241, 16
        %s243 = scalar_lea.vmem [#allocation7], %s242
        %p244 = scmp.lt.s32.totalorder %s21, 1
        %s245 = scalar_select %p244, %s21, 1
        %s246 = smul.addr %s245, 2
        %s247 = smul.addr %s246, 8
        %s248 = scalar_lea.vmem %s0, %s247
        %v250 = vld [vmem:[%s3] sm:$0xff]
        %s251 = scalar_lea.vmem %s3, 8
        %v252 = vld [vmem:[%s251] sm:$0xff]
        %s253 = scalar_lea.vmem %s3, 16
        %v254 = vld [vmem:[%s253] sm:$0xff]
        %s255 = scalar_lea.vmem %s3, 24
        %v256 = vld [vmem:[%s255] sm:$0xff]
        %v257 = vld [vmem:[%s248] sm:$0xff]
        %v258 = vld [vmem:[%s248 + $0x8] sm:$0xff]
        %260 = vset.pattern.permute.xlu0 0
        %261 = vperm.xlu0 %260, %v250
        %v262 = vpop.permute.xlu0 %261
        %v264 = vmul.f32 %v257, %v262
        %v265 = vmul.f32 %v258, %v262
        %267 = vset.pattern.permute.xlu0 0
        %268 = vperm.xlu0 %267, %v252
        %v269 = vpop.permute.xlu0 %268
        %v271 = vadd.f32 %v264, %v269
        %v272 = vadd.f32 %v265, %v269
        %v273 = vmul.f32 %v271, 0.1
        %v274 = vmul.f32 %v272, 0.1
        %v275 = vmax.f32 %v271, %v273
        %v276 = vmax.f32 %v272, %v274
        %278 = vrot.lane.b32.xlu0 %v276, 17
        %v279 = vpop.permute.xlu0 %278
        %282 = vrot.lane.b32.xlu0 %v275, 17
        %v283 = vpop.permute.xlu0 %282
        %vm284 = vcmask 138240
        %v285 = vsel %vm284, %v283, %v279
        %v288 = vsel %vm284, %v279, %v283
        %v289 = vld [vmem:[%s4] sm:$0x3]
        %v291 = vlaneseq
        %v292 = vshrl.u32 %v291, 7
        %v293 = vsub.s32 0, %v292
        %v294 = vrot.slane %v289, %v293
        %v295 = vlaneseq
        %v296 = vshrl.u32 %v295, 7
        %v297 = vsub.s32 1, %v296
        %v298 = vrot.slane %v289, %v297
        %v301 = vmul.f32 %v288, %v294
        %v302 = vmul.f32 %v285, %v298
        %303 = vrot.lane.b32.xlu0 %v276, 16
        %v304 = vpop.permute.xlu0 %303
        %306 = vrot.lane.b32.xlu0 %v275, 16
        %v307 = vpop.permute.xlu0 %306
        %vm308 = vcmask 130048
        %v309 = vsel %vm308, %v307, %v304
        %v312 = vsel %vm308, %v304, %v307
        %s313 = scalar_lea.vmem %s4, 2
        %v314 = vld [vmem:[%s313] sm:$0x3]
        %v316 = vlaneseq
        %v317 = vshrl.u32 %v316, 7
        %v318 = vsub.s32 0, %v317
        %v319 = vrot.slane %v314, %v318
        %v320 = vlaneseq
        %v321 = vshrl.u32 %v320, 7
        %v322 = vsub.s32 1, %v321
        %v323 = vrot.slane %v314, %v322
        %v326 = vmul.f32 %v312, %v319
        %v327 = vmul.f32 %v309, %v323
        %328 = vrot.lane.b32.xlu0 %v276, 15
        %v329 = vpop.permute.xlu0 %328
        %331 = vrot.lane.b32.xlu0 %v275, 15
        %v332 = vpop.permute.xlu0 %331
        %vm333 = vcmask 121856
        %v334 = vsel %vm333, %v332, %v329
        %v337 = vsel %vm333, %v329, %v332
        %s338 = scalar_lea.vmem %s4, 4
        %v339 = vld [vmem:[%s338] sm:$0x3]
        %v341 = vlaneseq
        %v342 = vshrl.u32 %v341, 7
        %v343 = vsub.s32 0, %v342
        %v344 = vrot.slane %v339, %v343
        %v345 = vlaneseq
        %v346 = vshrl.u32 %v345, 7
        %v347 = vsub.s32 1, %v346
        %v348 = vrot.slane %v339, %v347
        %v351 = vmul.f32 %v337, %v344
        %v352 = vmul.f32 %v334, %v348
        %353 = vrot.lane.b32.xlu0 %v276, 1
        %v354 = vpop.permute.xlu0 %353
        %356 = vrot.lane.b32.xlu0 %v275, 1
        %v357 = vpop.permute.xlu0 %356
        %vm358 = vcmask 7168
        %v359 = vsel %vm358, %v357, %v354
        %v362 = vsel %vm358, %v354, %v357
        %s363 = scalar_lea.vmem %s4, 6
        %v364 = vld [vmem:[%s363] sm:$0x3]
        %v366 = vlaneseq
        %v367 = vshrl.u32 %v366, 7
        %v368 = vsub.s32 0, %v367
        %v369 = vrot.slane %v364, %v368
        %v370 = vlaneseq
        %v371 = vshrl.u32 %v370, 7
        %v372 = vsub.s32 1, %v371
        %v373 = vrot.slane %v364, %v372
        %v376 = vmul.f32 %v362, %v369
        %v377 = vmul.f32 %v359, %v373
        %378 = vrot.lane.b32.xlu0 %v275, 127
        %v379 = vpop.permute.xlu0 %378
        %380 = vrot.lane.b32.xlu0 %v276, 127
        %v381 = vpop.permute.xlu0 %380
        %vm382 = vcmask 1039360
        %v383 = vsel %vm382, %v379, %v381
        %v387 = vsel %vm382, %v381, %v379
        %s388 = scalar_lea.vmem %s4, 10
        %v389 = vld [vmem:[%s388] sm:$0x3]
        %v391 = vlaneseq
        %v392 = vshrl.u32 %v391, 7
        %v393 = vsub.s32 0, %v392
        %v394 = vrot.slane %v389, %v393
        %v395 = vlaneseq
        %v396 = vshrl.u32 %v395, 7
        %v397 = vsub.s32 1, %v396
        %v398 = vrot.slane %v389, %v397
        %v401 = vmul.f32 %v383, %v394
        %v402 = vmul.f32 %v387, %v398
        %403 = vrot.lane.b32.xlu0 %v275, 113
        %v404 = vpop.permute.xlu0 %403
        %405 = vrot.lane.b32.xlu0 %v276, 113
        %v406 = vpop.permute.xlu0 %405
        %vm407 = vcmask 924672
        %v408 = vsel %vm407, %v404, %v406
        %v412 = vsel %vm407, %v406, %v404
        %s413 = scalar_lea.vmem %s4, 12
        %v414 = vld [vmem:[%s413] sm:$0x3]
        %v416 = vlaneseq
        %v417 = vshrl.u32 %v416, 7
        %v418 = vsub.s32 0, %v417
        %v419 = vrot.slane %v414, %v418
        %v420 = vlaneseq
        %v421 = vshrl.u32 %v420, 7
        %v422 = vsub.s32 1, %v421
        %v423 = vrot.slane %v414, %v422
        %v426 = vmul.f32 %v408, %v419
        %v427 = vmul.f32 %v412, %v423
        %428 = vrot.lane.b32.xlu0 %v275, 112
        %v429 = vpop.permute.xlu0 %428
        %430 = vrot.lane.b32.xlu0 %v276, 112
        %v431 = vpop.permute.xlu0 %430
        %vm432 = vcmask 916480
        %v433 = vsel %vm432, %v429, %v431
        %v437 = vsel %vm432, %v431, %v429
        %s438 = scalar_lea.vmem %s4, 14
        %v439 = vld [vmem:[%s438] sm:$0x3]
        %v441 = vlaneseq
        %v442 = vshrl.u32 %v441, 7
        %v443 = vsub.s32 0, %v442
        %v444 = vrot.slane %v439, %v443
        %v445 = vlaneseq
        %v446 = vshrl.u32 %v445, 7
        %v447 = vsub.s32 1, %v446
        %v448 = vrot.slane %v439, %v447
        %v451 = vmul.f32 %v433, %v444
        %v452 = vmul.f32 %v437, %v448
        %453 = vrot.lane.b32.xlu0 %v275, 111
        %v454 = vpop.permute.xlu0 %453
        %455 = vrot.lane.b32.xlu0 %v276, 111
        %v456 = vpop.permute.xlu0 %455
        %vm457 = vcmask 908288
        %v458 = vsel %vm457, %v454, %v456
        %v462 = vsel %vm457, %v456, %v454
        %s463 = scalar_lea.vmem %s4, 16
        %v464 = vld [vmem:[%s463] sm:$0x3]
        %v466 = vlaneseq
        %v467 = vshrl.u32 %v466, 7
        %v468 = vsub.s32 0, %v467
        %v469 = vrot.slane %v464, %v468
        %v470 = vlaneseq
        %v471 = vshrl.u32 %v470, 7
        %v472 = vsub.s32 1, %v471
        %v473 = vrot.slane %v464, %v472
        %v476 = vmul.f32 %v458, %v469
        %v477 = vmul.f32 %v462, %v473
        %v478 = vpack.c.bf16 %v326, %v301
        %v479 = vpack.c.bf16 %v327, %v302
        %v480 = vpack.c.bf16 %v376, %v351
        %v481 = vpack.c.bf16 %v377, %v352
        %v482 = vpack.c.bf16 %v401, %v275
        %v483 = vpack.c.bf16 %v402, %v276
        %v484 = vpack.c.bf16 %v451, %v426
        %v485 = vpack.c.bf16 %v452, %v427
        %v486 = vpack.c.bf16 %v476, %v476
        %v487 = vpack.c.bf16 %v477, %v477
        %v488 = vld [vmem:[#allocation2] sm:$0xf]
        %vm489 = vcmask 588800
        %v491 = vsel %vm489, %v488, 0
        %vm493 = vcmask 1043456
        %v495 = vsel %vm493, %v486, 0
        %v498 = vsel %vm493, %v487, 0
        %500 = vmatprep.subr.bf16.mxu0 %v479
        %501 = vmatpush1.bf16.msra.mxu0 %v478
        %502 = vmatprep.subr.bf16.mxu0 %v481
        %503 = vmatpush1.bf16.msra.mxu0 %v480
        %504 = vmatprep.subr.bf16.mxu0 %v483
        %505 = vmatpush1.bf16.msra.mxu0 %v482
        %506 = vmatprep.subr.bf16.mxu0 %v485
        %507 = vmatpush1.bf16.msra.mxu0 %v484
        %508 = vmatprep.subr.bf16.mxu0 %v498
        %509 = vmatpush1.bf16.msra.mxu0 %v495
        %510 = vmatprep.subr.bf16.mxu0 0
        %511 = vmatpush1.bf16.msra.mxu0 0
        %512 = vmatprep.subr.bf16.mxu0 0
        %513 = vmatpush1.bf16.msra.mxu0 0
        %514 = vmatprep.subr.bf16.mxu0 0
        %515 = vmatpush1.bf16.msra.mxu0 0
        %516 = vmatprep.subr.bf16.mxu0 0
        %517 = vmatpush1.bf16.msra.mxu0 0
        %518 = vmatprep.subr.bf16.mxu0 0
        %519 = vmatpush1.bf16.msra.mxu0 0
        %520 = vmatprep.subr.bf16.mxu0 0
        %521 = vmatpush1.bf16.msra.mxu0 0
        %522 = vmatprep.subr.bf16.mxu0 0
        %523 = vmatpush1.bf16.msra.mxu0 0
        %524 = vmatprep.subr.bf16.mxu0 0
        %525 = vmatpush1.bf16.msra.mxu0 0
        %526 = vmatprep.subr.bf16.mxu0 0
        %527 = vmatpush1.bf16.msra.mxu0 0
        %528 = vmatprep.subr.bf16.mxu0 0
        %529 = vmatpush1.bf16.msra.mxu0 0
        %530 = vmatprep.subr.bf16.mxu0 0
        %531 = vmatpush1.bf16.msra.mxu0 0
        %532 = vmatprep.mubr.bf16.mxu0 0
        %533 = vmatmul.mubr.bf16.gmra.mrb[0].mxu0 %v491
        %v534 = vpop.f32.mrb[0].mxu0
        %v535 = vadd.f32 0.0, %v534
        %v536 = vpop.f32.mrb[0].mxu0
        %v537 = vadd.f32 0.0, %v536
        %v538 = vpop.f32.mrb[0].mxu0
        %v539 = vpop.f32.mrb[0].mxu0
        %540 = vdwg.mxu0
        %542 = vset.pattern.permute.xlu0 0
        %543 = vperm.xlu0 %542, %v254
        %v544 = vpop.permute.xlu0 %543
        %v546 = vmul.f32 %v535, %v544
        %v547 = vmul.f32 %v537, %v544
        %549 = vset.pattern.permute.xlu0 0
        %550 = vperm.xlu0 %549, %v256
        %v551 = vpop.permute.xlu0 %550
        %v553 = vadd.f32 %v546, %v551
        %v554 = vadd.f32 %v547, %v551
        %v555 = vmul.f32 %v553, 0.1
        %v556 = vmul.f32 %v554, 0.1
        %v557 = vmax.f32 %v553, %v555
        %v558 = vmax.f32 %v554, %v556
        %560 = vrot.lane.b32.xlu0 %v558, 17
        %v561 = vpop.permute.xlu0 %560
        %564 = vrot.lane.b32.xlu0 %v557, 17
        %v565 = vpop.permute.xlu0 %564
        %v566 = vsel %vm284, %v565, %v561
        %v569 = vsel %vm284, %v561, %v565
        %v570 = vmul.f32 %v569, %v294
        %v571 = vmul.f32 %v566, %v298
        %572 = vrot.lane.b32.xlu0 %v558, 16
        %v573 = vpop.permute.xlu0 %572
        %575 = vrot.lane.b32.xlu0 %v557, 16
        %v576 = vpop.permute.xlu0 %575
        %v577 = vsel %vm308, %v576, %v573
        %v580 = vsel %vm308, %v573, %v576
        %v581 = vmul.f32 %v580, %v319
        %v582 = vmul.f32 %v577, %v323
        %583 = vrot.lane.b32.xlu0 %v558, 15
        %v584 = vpop.permute.xlu0 %583
        %586 = vrot.lane.b32.xlu0 %v557, 15
        %v587 = vpop.permute.xlu0 %586
        %v588 = vsel %vm333, %v587, %v584
        %v591 = vsel %vm333, %v584, %v587
        %v592 = vmul.f32 %v591, %v344
        %v593 = vmul.f32 %v588, %v348
        %594 = vrot.lane.b32.xlu0 %v558, 1
        %v595 = vpop.permute.xlu0 %594
        %597 = vrot.lane.b32.xlu0 %v557, 1
        %v598 = vpop.permute.xlu0 %597
        %v599 = vsel %vm358, %v598, %v595
        %v602 = vsel %vm358, %v595, %v598
        %v603 = vmul.f32 %v602, %v369
        %v604 = vmul.f32 %v599, %v373
        %605 = vrot.lane.b32.xlu0 %v557, 127
        %v606 = vpop.permute.xlu0 %605
        %607 = vrot.lane.b32.xlu0 %v558, 127
        %v608 = vpop.permute.xlu0 %607
        %v609 = vsel %vm382, %v606, %v608
        %v613 = vsel %vm382, %v608, %v606
        %v614 = vmul.f32 %v609, %v394
        %v615 = vmul.f32 %v613, %v398
        %616 = vrot.lane.b32.xlu0 %v557, 113
        %v617 = vpop.permute.xlu0 %616
        %618 = vrot.lane.b32.xlu0 %v558, 113
        %v619 = vpop.permute.xlu0 %618
        %v620 = vsel %vm407, %v617, %v619
        %v624 = vsel %vm407, %v619, %v617
        %v625 = vmul.f32 %v620, %v419
        %v626 = vmul.f32 %v624, %v423
        %627 = vrot.lane.b32.xlu0 %v557, 112
        %v628 = vpop.permute.xlu0 %627
        %629 = vrot.lane.b32.xlu0 %v558, 112
        %v630 = vpop.permute.xlu0 %629
        %v631 = vsel %vm432, %v628, %v630
        %v635 = vsel %vm432, %v630, %v628
        %v636 = vmul.f32 %v631, %v444
        %v637 = vmul.f32 %v635, %v448
        %638 = vrot.lane.b32.xlu0 %v557, 111
        %v639 = vpop.permute.xlu0 %638
        %640 = vrot.lane.b32.xlu0 %v558, 111
        %v641 = vpop.permute.xlu0 %640
        %v642 = vsel %vm457, %v639, %v641
        %v646 = vsel %vm457, %v641, %v639
        %v647 = vmul.f32 %v642, %v469
        %v648 = vmul.f32 %v646, %v473
        %v649 = vpack.c.bf16 %v581, %v570
        %v650 = vpack.c.bf16 %v582, %v571
        %v651 = vpack.c.bf16 %v603, %v592
        %v652 = vpack.c.bf16 %v604, %v593
        %v653 = vpack.c.bf16 %v614, %v557
        %v654 = vpack.c.bf16 %v615, %v558
        %v655 = vpack.c.bf16 %v636, %v625
        %v656 = vpack.c.bf16 %v637, %v626
        %v657 = vpack.c.bf16 %v647, %v647
        %v658 = vpack.c.bf16 %v648, %v648
        %v659 = vld [vmem:[#allocation5] sm:$0xf]
        %v661 = vsel %vm489, %v659, 0
        %v664 = vsel %vm493, %v657, 0
        %v667 = vsel %vm493, %v658, 0
        %669 = vmatprep.subr.bf16.mxu0 %v650
        %670 = vmatpush1.bf16.msra.mxu0 %v649
        %671 = vmatprep.subr.bf16.mxu0 %v652
        %672 = vmatpush1.bf16.msra.mxu0 %v651
        %673 = vmatprep.subr.bf16.mxu0 %v654
        %674 = vmatpush1.bf16.msra.mxu0 %v653
        %675 = vmatprep.subr.bf16.mxu0 %v656
        %676 = vmatpush1.bf16.msra.mxu0 %v655
        %677 = vmatprep.subr.bf16.mxu0 %v667
        %678 = vmatpush1.bf16.msra.mxu0 %v664
        %679 = vmatprep.subr.bf16.mxu0 0
        %680 = vmatpush1.bf16.msra.mxu0 0
        %681 = vmatprep.subr.bf16.mxu0 0
        %682 = vmatpush1.bf16.msra.mxu0 0
        %683 = vmatprep.subr.bf16.mxu0 0
        %684 = vmatpush1.bf16.msra.mxu0 0
        %685 = vmatprep.subr.bf16.mxu0 0
        %686 = vmatpush1.bf16.msra.mxu0 0
        %687 = vmatprep.subr.bf16.mxu0 0
        %688 = vmatpush1.bf16.msra.mxu0 0
        %689 = vmatprep.subr.bf16.mxu0 0
        %690 = vmatpush1.bf16.msra.mxu0 0
        %691 = vmatprep.subr.bf16.mxu0 0
        %692 = vmatpush1.bf16.msra.mxu0 0
        %693 = vmatprep.subr.bf16.mxu0 0
        %694 = vmatpush1.bf16.msra.mxu0 0
        %695 = vmatprep.subr.bf16.mxu0 0
        %696 = vmatpush1.bf16.msra.mxu0 0
        %697 = vmatprep.subr.bf16.mxu0 0
        %698 = vmatpush1.bf16.msra.mxu0 0
        %699 = vmatprep.subr.bf16.mxu0 0
        %700 = vmatpush1.bf16.msra.mxu0 0
        %701 = vmatprep.mubr.bf16.mxu0 0
        %702 = vmatmul.mubr.bf16.gmra.mrb[0].mxu0 %v661
        %v703 = vpop.f32.mrb[0].mxu0
        %v704 = vadd.f32 %v257, %v703
        %v705 = vpop.f32.mrb[0].mxu0
        %v706 = vadd.f32 %v258, %v705
        %v707 = vpop.f32.mrb[0].mxu0
        %v708 = vpop.f32.mrb[0].mxu0
        %709 = vdwg.mxu0
        %710 = vst [vmem:[%s243] sm:$0xff] %v704
        %711 = vst [vmem:[%s243 + $0x8] sm:$0xff] %v706
        %s712 = sand.u32 %s139, 1
        %s713 = scalar_lea.sflag [#allocation4], %s712
        %s714 = sand.u32 %s139, 1
        %s715 = smul.addr %s714, 16
        %s716 = scalar_lea.vmem [#allocation7], %s715
        // Predicated region
        $region49: #{tpu_custom_call.1} parent=39 // pred_check
          %p717 = pneg %p149
        $region50: #{tpu_custom_call.1} parent=39 // pred_check_branch
          %719 = sbr.rel (%p717) target = $region52
        $region51: #{tpu_custom_call.1} parent=39 // pred_region
          %s721 = ssub.s32 256, 256
          %722 = vsyncadd %s713, %s721
          %s723 = smul.addr %s21, 2
          %s724 = smul.addr %s723, 128
          %s725 = scalar_lea.hbm %s5, %s724
          %s727 = sshll.u32 %s716, 4
          %s728 = int_to_ptr.vmem [resolvable:$true] %s727
          %730 = dma.vmem_to_hbm [thread:$0]  %s728, 256, %s725, %s713
        $region52: #{tpu_custom_call.1} parent=39 // pred_fallthru
          _
      $region40: #{tpu_custom_call.1} parent=5 // pred_fallthru
        _
      %p731 = scmp.le.s32.totalorder 2, %s16
      // Predicated region
      $region53: #{tpu_custom_call.1} parent=5 // pred_check
        %p732 = pneg %p731
      $region54: #{tpu_custom_call.1} parent=5 // pred_check_branch
        %734 = sbr.rel (%p732) target = $region56
      $region55: #{tpu_custom_call.1} parent=5 // pred_region
        %s735 = ssub.s32 %s16, 2
        // Predicated region
        $region57: #{tpu_custom_call.1} parent=55 // pred_check
          %p736 = pneg %p155
        $region58: #{tpu_custom_call.1} parent=55 // pred_check_branch
          %738 = sbr.rel (%p736) target = $region60
        $region59: #{tpu_custom_call.1} parent=55 // pred_region
          %s739 = sand.u32 %s140, 1
          %s740 = scalar_lea.sflag [#allocation4], %s739
          %s741 = sand.u32 %s140, 1
          %s742 = smul.addr %s741, 16
          %s743 = scalar_lea.vmem [#allocation7], %s742
          %744 = dma.done %s740, 256
        $region60: #{tpu_custom_call.1} parent=55 // pred_fallthru
          _
      $region56: #{tpu_custom_call.1} parent=5 // pred_fallthru
        _
    $region6: #{tpu_custom_call.1} parent=1 // loop_footer
      %s20 = sadd.s32 1, %s16
    $region7: #{tpu_custom_call.1} parent=1 // loop_footer_branch
      %15 = sbr.rel target = $region3
    $region8: #{tpu_custom_call.1} parent=1 // loop_exit
      _
    %745 = vsyncpa [#allocation3], 1
    %s746 = scalar_lea.sflag [#allocation3], 1
    %747 = vsyncpa %s746, 1
    %748 = vsyncpa [#allocation6], 1
    %749 = vsyncpa [#allocation4], 1
    %s750 = scalar_lea.sflag [#allocation4], 1
    %751 = vsyncpa %s750, 1

</llo_original>
